<compile_context>
chip_gen: v5e
topology: v5e:2x2
jax: 0.10.0
libtpu: 0.0.40
codegen_flags: <defaults>
</compile_context>

<pallas_src>
import functools

import jax
import jax.numpy as jnp
from jax import lax
from jax.experimental import pallas as pl
from jax.experimental.pallas import tpu as pltpu

_LANE = 128
_ELEM_BUDGET = 1 << 20     # elements per data block (~4 MiB f32 / ~2 MiB bf16)
_TILE_B_MAX = 2048         # keeps the lane-padded (tile_b, 1) lens block small


def _cdiv(a, b):
    return -(-a // b)


def _round_up(x, m):
    return ((x + m - 1) // m) * m


def _allow_megacore_split():
    """True iff the chip has >1 TensorCore (megacore); v5e/v6e have one."""
    try:
        kind = jax.devices()[0].device_kind.lower()
    except Exception:
        return False
    single_tc = any(tag in kind for tag in
                    ("v5e", "v5 lite", "v5litepod", "v6e", "v6 lite"))
    return not single_tc


def _choose_tiles(B, T, elem_budget):
    """Pick (tile_b, tile_t) blocking of the raw (B, T) layout (no repack)."""
    # Common case: whole problem in one block -> one DMA, no pipeline steps.
    if B * T <= elem_budget and B <= _TILE_B_MAX:
        return B, T
    # Modest T: keep full time rows (full last dim is always a legal block dim).
    if T <= elem_budget // 8:
        tile_b = (elem_budget // max(T, 1)) // 8 * 8
        tile_b = max(8, min(tile_b, _TILE_B_MAX, _round_up(B, 8)))
        return tile_b, T
    # Very long T: tile the time axis in lane multiples.
    tile_b = B if B <= 8 else 8
    tile_t = (elem_budget // tile_b) // _LANE * _LANE
    tile_t = max(_LANE, min(tile_t, _round_up(T, _LANE)))
    return tile_b, tile_t


def _masked_loss_kernel(p_ref, t_ref, len_ref, out_ref, acc_ref, *, use_abs, tile_t):
    """One grid step: accumulate masked |diff| or diff^2 into a VMEM accumulator.

    Grid is (nsplit, inner_b, grid_t).  The accumulator persists across the two
    inner (reduction) axes and is flushed to SMEM once per nsplit slice.
    p_ref, t_ref : (tile_b, tile_t) input tiles (upcast to f32 in-kernel)
    len_ref      : (tile_b, 1) int32 -- valid frames per batch row (0 for pad rows)
    out_ref      : (1, 1) f32 SMEM   -- written once on the last reduction step
    acc_ref      : (tile_b, tile_t) f32 VMEM scratch
    """
    step = pl.program_id(1) * pl.num_programs(2) + pl.program_id(2)
    nsteps = pl.num_programs(1) * pl.num_programs(2)

    @pl.when(step == 0)
    def _init():
        acc_ref[...] = jnp.zeros_like(acc_ref)

    p = p_ref[...].astype(jnp.float32)
    t = t_ref[...].astype(jnp.float32)
    # Absolute time index of every lane; frames with t >= ilens[b] (including the
    # unspecified contents of ragged trailing blocks in batch or time) are dropped
    # by the select, so the wrapper never pads the data tensors.
    t_abs = pl.program_id(2) * tile_t + lax.broadcasted_iota(jnp.int32, p.shape, 1)
    mask = t_abs < len_ref[...]                       # (tile_b, tile_t) bool
    diff = p - t
    val = jnp.abs(diff) if use_abs else diff * diff
    acc_ref[...] += jnp.where(mask, val, 0.0)         # pure VPU work per step
    # NOTE: keep this a select (not a multiply) -- masked-out garbage may be NaN/Inf.

    @pl.when(step == nsteps - 1)
    def _finalize():
        out_ref[0, 0] = jnp.sum(acc_ref[...])         # single XLU reduce at the end


def _masked_sum(p2, t2, lens2d, *, nsplit, inner_b, grid_t, tile_b, tile_t, use_abs):
    B, T = p2.shape
    kernel = functools.partial(_masked_loss_kernel, use_abs=use_abs, tile_t=tile_t)
    bytes_accessed = int(B * T * (p2.dtype.itemsize + t2.dtype.itemsize)
                         + lens2d.size * 4 + nsplit * 4)
    partials = pl.pallas_call(
        kernel,
        out_shape=jax.ShapeDtypeStruct((nsplit, 1), jnp.float32),
        grid=(nsplit, inner_b, grid_t),
        in_specs=[
            pl.BlockSpec((tile_b, tile_t), lambda s, ib, it: (s * inner_b + ib, it)),
            pl.BlockSpec((tile_b, tile_t), lambda s, ib, it: (s * inner_b + ib, it)),
            pl.BlockSpec((tile_b, 1), lambda s, ib, it: (s * inner_b + ib, 0)),
        ],
        out_specs=pl.BlockSpec((1, 1), lambda s, ib, it: (s, 0),
                               memory_space=pltpu.MemorySpace.SMEM),
        scratch_shapes=[pltpu.VMEM((tile_b, tile_t), jnp.float32)],
        compiler_params=pltpu.CompilerParams(
            dimension_semantics=("parallel", "arbitrary", "arbitrary"),
            vmem_limit_bytes=30 * 1024 * 1024),
        cost_estimate=pl.CostEstimate(
            flops=3 * B * T, transcendentals=0, bytes_accessed=bytes_accessed),
    )(p2, t2, lens2d)
    return jnp.sum(partials)


def prosody_criterions_forward(p_outs, ps, ilens, typ=None,
                               use_masking=True, use_weighted_masking=False,
                               elem_budget=_ELEM_BUDGET):
    """JAX/Pallas equivalent of prosody_criterions.forward.

    Args:
        p_outs: (B, Tmax, 1) predictions.
        ps:     (B, Tmax, 1) targets.
        ilens:  (B,) int lengths.
        typ:    None -> MSE (mean); anything else -> L1 (mean).
    Returns:
        scalar float32 loss.
    """
    assert use_masking != use_weighted_masking or not use_masking
    if use_weighted_masking:
        # TODO(synk): the weighted-masking reduction branch of the original module
        # is not reachable from its forward; not implemented.
        raise NotImplementedError("use_weighted_masking=True is not supported")

    B, T, _ = p_outs.shape
    p2 = p_outs[..., 0]          # (B, T) -- no HBM copy / padding of data tensors
    t2 = ps[..., 0]

    if use_masking:
        lens = jnp.minimum(ilens.astype(jnp.int32), T)
    else:
        lens = jnp.full((B,), T, dtype=jnp.int32)

    # ---- static tiling decisions over the original (B, T) layout -------------
    tile_b, tile_t = _choose_tiles(B, T, elem_budget)
    n_b_blocks = _cdiv(B, tile_b)
    grid_t = _cdiv(T, tile_t)

    nsplit = 1
    if _allow_megacore_split() and n_b_blocks >= 2 and n_b_blocks % 2 == 0:
        nsplit = 2                       # both TensorCores keep full-size tiles
    inner_b = n_b_blocks // nsplit

    # Only the tiny (B,) length vector gets padded (with zeros => masked out);
    # ragged trailing data blocks are consumed in place.
    rows_pad = n_b_blocks * tile_b
    lens_pad = jnp.pad(lens, (0, rows_pad - B)) if rows_pad != B else lens
    lens2d = lens_pad.reshape(rows_pad, 1)

    total = _masked_sum(p2, t2, lens2d, nsplit=nsplit, inner_b=inner_b,
                        grid_t=grid_t, tile_b=tile_b, tile_t=tile_t,
                        use_abs=(typ is not None))

    # Valid-element count depends only on ilens -> plain JAX (no in-kernel reduce).
    # Note: all-zero ilens gives 0/0 = NaN, matching torch masked_select + mean.
    cnt = jnp.sum(lens).astype(jnp.float32)
    return total / cnt


if __name__ == "__main__":
    key = jax.random.PRNGKey(0)
    k1, k2, k3, k4, k5, k6 = jax.random.split(key, 6)

    def ref_loss(p, t, il, use_abs):
        mask = jnp.arange(p.shape[1])[None, :] < il[:, None]
        d = p[..., 0] - t[..., 0]
        v = jnp.abs(d) if use_abs else d * d
        return jnp.sum(jnp.where(mask, v, 0.0)) / jnp.sum(mask)

    # Case 1: shapes consistent with the module: (B, Tmax, 1), B=2, Tmax=8.
    B, Tmax = 2, 8
    p_outs = jax.random.normal(k1, (B, Tmax, 1), dtype=jnp.float32)
    ps = jax.random.normal(k2, (B, Tmax, 1), dtype=jnp.float32)
    ilens = jnp.array([8, 5], dtype=jnp.int32)
    mse = jax.block_until_ready(prosody_criterions_forward(p_outs, ps, ilens))
    l1 = jax.block_until_ready(prosody_criterions_forward(p_outs, ps, ilens, typ="L1"))
    assert jnp.allclose(mse, ref_loss(p_outs, ps, ilens, False), rtol=1e-6, atol=1e-6)
    assert jnp.allclose(l1, ref_loss(p_outs, ps, ilens, True), rtol=1e-6, atol=1e-6)

    # Case 2: T not a multiple of 128, ragged lengths (single-block fast path).
    B2, T2 = 4, 300
    p2 = jax.random.normal(k3, (B2, T2, 1), dtype=jnp.float32)
    t2 = jax.random.normal(k4, (B2, T2, 1), dtype=jnp.float32)
    il2 = jnp.array([300, 123, 257, 1], dtype=jnp.int32)
    mse2 = jax.block_until_ready(prosody_criterions_forward(p2, t2, il2))
    l12 = jax.block_until_ready(prosody_criterions_forward(p2, t2, il2, typ="L1"))
    assert jnp.allclose(mse2, ref_loss(p2, t2, il2, False), rtol=1e-5, atol=1e-6)
    assert jnp.allclose(l12, ref_loss(p2, t2, il2, True), rtol=1e-5, atol=1e-6)

    # Case 3: force the tiled multi-block path (ragged trailing time AND batch
    # blocks, lens zero-padding, megacore split when available) with a tiny
    # element budget so the test stays small.
    B3, T3 = 28, 384
    p3 = jax.random.normal(k5, (B3, T3, 1), dtype=jnp.float32)
    t3 = jax.random.normal(k6, (B3, T3, 1), dtype=jnp.float32)
    il3 = (jnp.arange(B3, dtype=jnp.int32) * 17) % (T3 + 1)
    mse3 = jax.block_until_ready(
        prosody_criterions_forward(p3, t3, il3, elem_budget=2048))
    l13 = jax.block_until_ready(
        prosody_criterions_forward(p3, t3, il3, typ="L1", elem_budget=2048))
    assert jnp.allclose(mse3, ref_loss(p3, t3, il3, False), rtol=1e-5, atol=1e-6)
    assert jnp.allclose(l13, ref_loss(p3, t3, il3, True), rtol=1e-5, atol=1e-6)

    print("KERNEL_OK")
</pallas_src>

<mosaic_0001>
module attributes {stable_mosaic.version = 11 : i64} {
  func.func @_masked_loss_kernel(%arg0: i32, %arg1: i32, %arg2: i32, %arg3: memref<2x8xf32, #tpu.memory_space<vmem>>, %arg4: memref<2x8xf32, #tpu.memory_space<vmem>>, %arg5: memref<2x1xi32, #tpu.memory_space<vmem>>, %arg6: memref<1x1xf32, #tpu.memory_space<smem>>, %arg7: memref<2x8xf32, #tpu.memory_space<vmem>>) attributes {dimension_semantics = [#tpu.dimension_semantics<parallel>, #tpu.dimension_semantics<arbitrary>, #tpu.dimension_semantics<arbitrary>], iteration_bounds = array<i64: 1, 1, 1>, scalar_prefetch = 0 : i64, scratch_operands = 1 : i64, tpu.core_type = #tpu.core_type<tc>, window_params = [{transform_indices = @transform_0, window_bounds = array<i64: 2, 8>}, {transform_indices = @transform_1, window_bounds = array<i64: 2, 8>}, {transform_indices = @transform_2, window_bounds = array<i64: 2, 1>}, {transform_indices = @transform_3, window_bounds = array<i64: 1, 1>}]} {
    %c1_i32 = arith.constant 1 : i32
    %0 = arith.muli %arg1, %c1_i32 : i32
    %1 = arith.addi %0, %arg2 : i32
    %c0_i32 = arith.constant 0 : i32
    %2 = arith.cmpi eq, %1, %c0_i32 : i32
    %3 = arith.extui %2 : i1 to i32
    %c0_i32_0 = arith.constant 0 : i32
    %4 = arith.cmpi ne, %3, %c0_i32_0 : i32
    scf.if %4 {
      %cst_12 = arith.constant 0.000000e+00 : f32
      %24 = vector.broadcast %cst_12 : f32 to vector<2x8xf32>
      %c0_13 = arith.constant 0 : index
      %c0_14 = arith.constant 0 : index
      %25 = vector.load %arg7[%c0_13, %c0_14] : memref<2x8xf32, #tpu.memory_space<vmem>>, vector<2x8xf32>
      tpu.vector_store %arg7[%c0_13, %c0_14], %24 {strides = array<i32>} : memref<2x8xf32, #tpu.memory_space<vmem>>, vector<2x8xf32>,
    } else {
    }
    %c0 = arith.constant 0 : index
    %c0_1 = arith.constant 0 : index
    %5 = vector.load %arg3[%c0, %c0_1] : memref<2x8xf32, #tpu.memory_space<vmem>>, vector<2x8xf32>
    %c0_2 = arith.constant 0 : index
    %c0_3 = arith.constant 0 : index
    %6 = vector.load %arg4[%c0_2, %c0_3] : memref<2x8xf32, #tpu.memory_space<vmem>>, vector<2x8xf32>
    %c8_i32 = arith.constant 8 : i32
    %7 = arith.muli %arg2, %c8_i32 : i32
    %8 = tpu.iota {dimensions = array<i32: 1>} : vector<2x8xi32>
    %9 = vector.broadcast %7 : i32 to vector<2x8xi32>
    %10 = arith.addi %9, %8 : vector<2x8xi32>
    %c0_4 = arith.constant 0 : index
    %c0_5 = arith.constant 0 : index
    %11 = vector.load %arg5[%c0_4, %c0_5] : memref<2x1xi32, #tpu.memory_space<vmem>>, vector<2x1xi32>
    %12 = vector.broadcast %11 : vector<2x1xi32> to vector<2x8xi32>
    %13 = arith.cmpi slt, %10, %12 : vector<2x8xi32>
    %14 = arith.subf %5, %6 : vector<2x8xf32>
    %15 = arith.mulf %14, %14 : vector<2x8xf32>
    %c0_6 = arith.constant 0 : index
    %c0_7 = arith.constant 0 : index
    %16 = vector.load %arg7[%c0_6, %c0_7] : memref<2x8xf32, #tpu.memory_space<vmem>>, vector<2x8xf32>
    %cst = arith.constant 0.000000e+00 : f32
    %17 = vector.broadcast %cst : f32 to vector<2x8xf32>
    %18 = arith.select %13, %15, %17 : vector<2x8xi1>, vector<2x8xf32>
    %19 = arith.addf %16, %18 : vector<2x8xf32>
    %c0_8 = arith.constant 0 : index
    %c0_9 = arith.constant 0 : index
    %20 = vector.load %arg7[%c0_8, %c0_9] : memref<2x8xf32, #tpu.memory_space<vmem>>, vector<2x8xf32>
    tpu.vector_store %arg7[%c0_8, %c0_9], %19 {strides = array<i32>} : memref<2x8xf32, #tpu.memory_space<vmem>>, vector<2x8xf32>,
    %c0_i32_10 = arith.constant 0 : i32
    %21 = arith.cmpi eq, %1, %c0_i32_10 : i32
    %22 = arith.extui %21 : i1 to i32
    %c0_i32_11 = arith.constant 0 : i32
    %23 = arith.cmpi ne, %22, %c0_i32_11 : i32
    scf.if %23 {
      %c0_12 = arith.constant 0 : index
      %c0_13 = arith.constant 0 : index
      %24 = vector.load %arg7[%c0_12, %c0_13] : memref<2x8xf32, #tpu.memory_space<vmem>>, vector<2x8xf32>
      %25 = vector.shape_cast %24 : vector<2x8xf32> to vector<1x2x8xf32>
      %cst_14 = arith.constant dense<0.000000e+00> : vector<1xf32>
      %26 = vector.multi_reduction <add>, %25, %cst_14 [1, 2] : vector<1x2x8xf32> to vector<1xf32>
      %27 = vector.shape_cast %26 : vector<1xf32> to vector<1x1x1xf32>
      %28 = vector.extract %27[0, 0, 0] : f32 from vector<1x1x1xf32>
      %c0_15 = arith.constant 0 : index
      %c0_16 = arith.constant 0 : index
      %29 = memref.load %arg6[%c0_15, %c0_16] : memref<1x1xf32, #tpu.memory_space<smem>>
      memref.store %28, %arg6[%c0_15, %c0_16] : memref<1x1xf32, #tpu.memory_space<smem>>
    } else {
    }
    return
  }
  func.func @transform_0(%arg0: i32, %arg1: i32, %arg2: i32) -> (i32, i32) {
    %c1_i32 = arith.constant 1 : i32
    %0 = arith.muli %arg0, %c1_i32 : i32
    %1 = arith.addi %0, %arg1 : i32
    %c0_i32 = arith.constant 0 : i32
    return %1, %arg2 : i32, i32
  }
  func.func @transform_1(%arg0: i32, %arg1: i32, %arg2: i32) -> (i32, i32) {
    %c1_i32 = arith.constant 1 : i32
    %0 = arith.muli %arg0, %c1_i32 : i32
    %1 = arith.addi %0, %arg1 : i32
    %c0_i32 = arith.constant 0 : i32
    return %1, %arg2 : i32, i32
  }
  func.func @transform_2(%arg0: i32, %arg1: i32, %arg2: i32) -> (i32, i32) {
    %c1_i32 = arith.constant 1 : i32
    %0 = arith.muli %arg0, %c1_i32 : i32
    %1 = arith.addi %0, %arg1 : i32
    %c0_i32 = arith.constant 0 : i32
    %c0_i32_0 = arith.constant 0 : i32
    return %1, %c0_i32 : i32, i32
  }
  func.func @transform_3(%arg0: i32, %arg1: i32, %arg2: i32) -> (i32, i32) {
    %c0_i32 = arith.constant 0 : i32
    %c0_i32_0 = arith.constant 0 : i32
    return %arg0, %c0_i32 : i32, i32
  }
}

</mosaic_0001>

<llo_original>
// kernel: tpu_custom_call.1
$region0: #{tpu_custom_call.1}
  #allocation0 [shape = 'u32[]', space=smem, size = 0x4, offset = 0x4, fixed_abs, tag = 'smem constant byte address 0x4 - core index']
  #allocation1 [shape = 'u32[72,128]{1,0:T(1,128)}', space=vmem, size = 0x9000, scoped, tag = 'internal scratch']
  #allocation2 [shape = 'f32[2,8]{1,0:T(2,128)}', space=vmem, size = 0x400, scoped, tag = 'scratch operand']
  %s0 = inlined_call_operand.vmem [shape: f32[2,8], index: 0, kind: input, shape index: {}]
  %s1 = inlined_call_operand.hbm [shape: f32[2,8], index: 1, kind: input, shape index: {}]
  %s2 = inlined_call_operand.vmem [shape: s32[2,1], index: 2, kind: input, shape index: {}]
  %s3 = inlined_call_operand.hbm [shape: f32[1,1], index: 3, kind: output, shape index: {}]
  %s4 = sld [smem:[#allocation0]]
  $region34: #{tpu_custom_call.1} parent=0
    _
  %s6 = ssub.s32 1, %s4
  %s7 = scalar_select 0, %s6, %s4
  $region1: #{tpu_custom_call.1} parent=0
    #allocation3 [shape = 'u8[1024]{0}', space=vmem, size = 0x400, scoped, tag = 'input window, operand 1, single buffered']
    #allocation4 [shape = 's32[1]{0}', space=sflag, size = 0x4, scoped, tag = 'scoped memory for tpu_custom_call.1']
    #allocation5 [shape = 's32[1]{0}', space=sflag, size = 0x4, scoped, tag = 'scoped memory for tpu_custom_call.1']
    #allocation6 [shape = 'u8[512]{0}', space=smem, size = 0x200, scoped, tag = 'output window, operand 0, single buffered']
    %8 = vsyncpa [#allocation4], 0
    %9 = vsyncpa [#allocation5], 0
    // Predicated region
    $region2: #{tpu_custom_call.1} parent=1 // pred_check
      _
    $region3: #{tpu_custom_call.1} parent=1 // pred_check_branch
      %11 = sbr.rel (0) target = $region5
    $region4: #{tpu_custom_call.1} parent=1 // pred_region
      %s12 = sadd.s32 0, 0
      %p13 = scmp.lt.s32.totalorder %s12, 0
      %s14 = scalar_select %p13, %s12, 0
      %s15 = smul.addr %s14, 2
      %s16 = scalar_lea.vmem %s0, %s15
      %s17 = sadd.s32 0, 0
    $region5: #{tpu_custom_call.1} parent=1 // pred_fallthru
      _
    // Predicated region
    $region6: #{tpu_custom_call.1} parent=1 // pred_check
      _
    $region7: #{tpu_custom_call.1} parent=1 // pred_check_branch
      %19 = sbr.rel (0) target = $region9
    $region8: #{tpu_custom_call.1} parent=1 // pred_region
      %s20 = sadd.s32 0, 0
      %22 = vsyncadd [#allocation4], 0
      %s23 = smul.addr %s20, 2
      %s24 = scalar_lea.hbm %s1, %s23
      %s26 = sshll.u32 %s24, 4
      %s27 = int_to_ptr.hbm [resolvable:$true] %s26
      %s28 = sshll.u32 [#allocation3], 4
      %s29 = int_to_ptr.vmem [resolvable:$true] %s28
      %31 = dma.hbm_to_vmem [thread:$0]  %s27, 32, %s29, [#allocation4]
    $region9: #{tpu_custom_call.1} parent=1 // pred_fallthru
      _
    // Predicated region
    $region10: #{tpu_custom_call.1} parent=1 // pred_check
      _
    $region11: #{tpu_custom_call.1} parent=1 // pred_check_branch
      %33 = sbr.rel (0) target = $region13
    $region12: #{tpu_custom_call.1} parent=1 // pred_region
      %s34 = sadd.s32 0, 0
      %p35 = scmp.lt.s32.totalorder %s34, 0
      %s36 = scalar_select %p35, %s34, 0
      %s37 = smul.addr %s36, 2
      %s38 = scalar_lea.vmem %s2, %s37
      %s39 = sadd.s32 0, 0
    $region13: #{tpu_custom_call.1} parent=1 // pred_fallthru
      _
    // Predicated region
    $region14: #{tpu_custom_call.1} parent=1 // pred_check
      _
    $region15: #{tpu_custom_call.1} parent=1 // pred_check_branch
      %41 = sbr.rel (0) target = $region17
    $region16: #{tpu_custom_call.1} parent=1 // pred_region
      %43 = dma.done [#allocation4], 32
    $region17: #{tpu_custom_call.1} parent=1 // pred_fallthru
      _
    %s44 = sadd.s32 0, 0
    %p45 = scmp.lt.s32.totalorder %s44, 0
    %s46 = scalar_select %p45, %s44, 0
    %s47 = smul.addr %s46, 2
    %s48 = scalar_lea.vmem %s0, %s47
    %s49 = sadd.s32 0, 0
    %p50 = scmp.lt.s32.totalorder %s49, 0
    %s51 = scalar_select %p50, %s49, 0
    %s52 = smul.addr %s51, 2
    %s53 = scalar_lea.vmem %s2, %s52
    %s54 = sadd.s32 0, 0
    %p55 = scmp.lt.s32.totalorder %s54, 0
    %s56 = scalar_select %p55, %s54, 0
    %s57 = smul.addr %s56, 2
    %s58 = scalar_lea.vmem %s0, %s57
    %s59 = sadd.s32 0, 0
    %s60 = sadd.s32 0, 0
    %s61 = sadd.s32 0, 0
    %p62 = scmp.lt.s32.totalorder %s61, 0
    %s63 = scalar_select %p62, %s61, 0
    %s64 = smul.addr %s63, 2
    %s65 = scalar_lea.vmem %s2, %s64
    %s66 = sadd.s32 0, 0
    %s67 = sadd.s32 0, 0
    %p68 = scmp.eq.s32.totalorder %s67, 0
    // Predicated region
    $region18: #{tpu_custom_call.1} parent=1 // pred_check
      %p69 = pneg %p68
    $region19: #{tpu_custom_call.1} parent=1 // pred_check_branch
      %71 = sbr.rel (%p69) target = $region21
    $region20: #{tpu_custom_call.1} parent=1 // pred_region
      %vm72 = vcmask 58368
      %73 = vst.msk [vmem:[#allocation2] sm:$0x3] %vm72, 0.0
    $region21: #{tpu_custom_call.1} parent=1 // pred_fallthru
      _
    %v74 = vld [vmem:[%s58] sm:$0x3]
    %v75 = vld [vmem:[#allocation3] sm:$0x3]
    %s76 = smul.u32 0, 8
    %v77 = vlaneseq
    %v78 = vand.u32 %v77, 127
    %v79 = vstv %s76
    %v80 = vadd.s32 %v79, %v78
    %v81 = vld [vmem:[%s65] sm:$0x3]
    %82 = vset.pattern.permute.xlu0 0
    %83 = vperm.xlu0 %82, %v81
    %v84 = vpop.permute.xlu0 %83
    %vm85 = vcmp.lt.s32.totalorder %v80, %v84
    %v86 = vsub.f32 %v74, %v75
    %v87 = vmul.f32 %v86, %v86
    %v88 = vld [vmem:[#allocation2] sm:$0x3]
    %v89 = vsel %vm85, %v87, 0.0
    %v90 = vadd.f32 %v88, %v89
    %vm91 = vcmask 58368
    %92 = vst.msk [vmem:[#allocation2] sm:$0x3] %vm91, %v90
    // Predicated region
    $region22: #{tpu_custom_call.1} parent=1 // pred_check
      %p93 = pneg %p68
    $region23: #{tpu_custom_call.1} parent=1 // pred_check_branch
      %95 = sbr.rel (%p93) target = $region25
    $region24: #{tpu_custom_call.1} parent=1 // pred_region
      %v96 = vld [vmem:[#allocation2] sm:$0x3]
      %v97 = vsel %vm91, %v96, 0.0
      %98 = vadd.xlane.f32.xlu0 %v97
      %v99 = vpop.xlane.xlu0 %98
      %v100 = vrot.slane %v99, 4
      %v101 = vadd.f32 %v99, %v100
      %v102 = vrot.slane %v101, 2
      %v103 = vadd.f32 %v101, %v102
      %v104 = vrot.slane %v103, 1
      %v105 = vadd.f32 %v103, %v104
      %s106 = vtos %v105
      %s107 = scalar_lea.smem [#allocation6], 0
      %108 = sst [smem:[%s107]] %s106
    $region25: #{tpu_custom_call.1} parent=1 // pred_fallthru
      _
    // Predicated region
    $region26: #{tpu_custom_call.1} parent=1 // pred_check
      _
    $region27: #{tpu_custom_call.1} parent=1 // pred_check_branch
      %110 = sbr.rel (0) target = $region29
    $region28: #{tpu_custom_call.1} parent=1 // pred_region
      %112 = vsyncadd [#allocation5], 0
      %s114 = sshll.u32 %s3, 4
      %s115 = int_to_ptr.hbm [resolvable:$true] %s114
      %117 = dma.smem_to_hbm [#allocation6], 16, %s115, [#allocation5]
    $region29: #{tpu_custom_call.1} parent=1 // pred_fallthru
      _
    // Predicated region
    $region30: #{tpu_custom_call.1} parent=1 // pred_check
      _
    $region31: #{tpu_custom_call.1} parent=1 // pred_check_branch
      %119 = sbr.rel (0) target = $region33
    $region32: #{tpu_custom_call.1} parent=1 // pred_region
      %121 = dma.done [#allocation5], 16
    $region33: #{tpu_custom_call.1} parent=1 // pred_fallthru
      _
    %122 = sfence
    %123 = vsyncpa [#allocation4], 1
    %124 = vsyncpa [#allocation5], 1

</llo_original>
